<compile_context>
chip_gen: v7x
topology: tpu7x:2x2x1
jax: 0.10.0
libtpu: 0.0.40
codegen_flags: <defaults>
</compile_context>

<pallas_src>
import functools

import jax
import jax.numpy as jnp
from jax.experimental import pallas as pl
from jax.experimental.pallas import tpu as pltpu


def _mlp_kernel(x1_ref, x2_ref, w1_ref, b1_ref, w2_ref, b2_ref, o1_ref, o2_ref):
    w1 = w1_ref[...]
    b1 = b1_ref[...]
    w2 = w2_ref[...]
    b2 = b2_ref[...]

    # Branch 1: fc2(relu(fc1(x1)))  -- fc1 may run bf16 MXU, accumulates f32.
    h1 = jnp.maximum(
        jnp.dot(x1_ref[...], w1, preferred_element_type=jnp.float32) + b1, 0.0)
    o1_ref[...] = (jnp.dot(h1, w2, preferred_element_type=jnp.float32)
                   + b2).astype(o1_ref.dtype)

    # Branch 2: same shared weights (already resident in VMEM / MXU-loaded).
    h2 = jnp.maximum(
        jnp.dot(x2_ref[...], w1, preferred_element_type=jnp.float32) + b1, 0.0)
    o2_ref[...] = (jnp.dot(h2, w2, preferred_element_type=jnp.float32)
                   + b2).astype(o2_ref.dtype)


@functools.partial(jax.jit, static_argnames=("block_batch", "cast_bf16"))
def multimodal_forward(x1, x2, w1, b1, w2, b2, *, block_batch=1024,
                       cast_bf16=True):
    """Two-branch shared-weight MLP forward in one Pallas kernel.

    x1, x2 : (B, in)     activations for the two modalities
    w1     : (in, 64)    fc1 weight (transposed vs. torch), b1: (1, 64)
    w2     : (64, out)   fc2 weight (transposed vs. torch), b2: (1, out)
    returns (out1, out2), each (B, out) float32.
    """
    batch, in_size = x1.shape
    hidden = w1.shape[1]
    out_size = w2.shape[1]

    if cast_bf16:
        # Halve the dominant HBM stream; fc2 path / biases stay f32.
        x1 = x1.astype(jnp.bfloat16)
        x2 = x2.astype(jnp.bfloat16)
        w1 = w1.astype(jnp.bfloat16)

    # Batch tile: aligned to the sublane packing of the x dtype; ragged last
    # block is handled by Pallas (masked output writes), so no jnp.pad.
    align = 16 if cast_bf16 else 8
    tm = min(block_batch, ((batch + align - 1) // align) * align)
    tm = ((tm + align - 1) // align) * align
    grid = (pl.cdiv(batch, tm),)

    x_bytes = 2 if cast_bf16 else 4
    flops = 2 * 2 * batch * (in_size * hidden + hidden * out_size)
    bytes_accessed = (2 * batch * in_size * x_bytes           # x1, x2 in
                      + in_size * hidden * x_bytes            # w1
                      + 4 * (hidden + hidden * out_size + out_size)  # b1,w2,b2
                      + 2 * batch * out_size * 4)             # out1, out2
    cost = pl.CostEstimate(flops=flops, transcendentals=0,
                           bytes_accessed=bytes_accessed)

    out1, out2 = pl.pallas_call(
        _mlp_kernel,
        out_shape=(jax.ShapeDtypeStruct((batch, out_size), jnp.float32),
                   jax.ShapeDtypeStruct((batch, out_size), jnp.float32)),
        grid=grid,
        in_specs=[
            pl.BlockSpec((tm, in_size), lambda i: (i, 0)),       # x1 tile
            pl.BlockSpec((tm, in_size), lambda i: (i, 0)),       # x2 tile
            pl.BlockSpec((in_size, hidden), lambda i: (0, 0)),   # w1 (resident)
            pl.BlockSpec((1, hidden), lambda i: (0, 0)),         # b1
            pl.BlockSpec((hidden, out_size), lambda i: (0, 0)),  # w2 (resident)
            pl.BlockSpec((1, out_size), lambda i: (0, 0)),       # b2
        ],
        out_specs=[
            pl.BlockSpec((tm, out_size), lambda i: (i, 0)),      # out1 tile
            pl.BlockSpec((tm, out_size), lambda i: (i, 0)),      # out2 tile
        ],
        compiler_params=pltpu.CompilerParams(
            dimension_semantics=("parallel",)),
        cost_estimate=cost,
    )(x1, x2, w1, b1, w2, b2)

    return out1, out2


def _reference(x1, x2, w1, b1, w2, b2):
    h1 = jnp.maximum(x1 @ w1 + b1, 0.0)
    h2 = jnp.maximum(x2 @ w1 + b1, 0.0)
    return h1 @ w2 + b2, h2 @ w2 + b2


if __name__ == "__main__":
    # Small shapes consistent with the module: input_size=32, hidden=64, output_size=8.
    batch, input_size, hidden, output_size = 4, 32, 64, 8

    key = jax.random.PRNGKey(0)
    kx1, kx2, kw1, kb1, kw2, kb2 = jax.random.split(key, 6)

    x1 = jax.random.normal(kx1, (batch, input_size), dtype=jnp.float32)
    x2 = jax.random.normal(kx2, (batch, input_size), dtype=jnp.float32)

    # Deterministic PyTorch-style uniform init (scaled by 1/sqrt(fan_in)).
    bound1 = 1.0 / jnp.sqrt(input_size)
    bound2 = 1.0 / jnp.sqrt(hidden)
    w1 = jax.random.uniform(kw1, (input_size, hidden), jnp.float32, -bound1, bound1)
    b1 = jax.random.uniform(kb1, (1, hidden), jnp.float32, -bound1, bound1)
    w2 = jax.random.uniform(kw2, (hidden, output_size), jnp.float32, -bound2, bound2)
    b2 = jax.random.uniform(kb2, (1, output_size), jnp.float32, -bound2, bound2)

    ref1, ref2 = _reference(x1, x2, w1, b1, w2, b2)

    # Default path: bf16 inputs/fc1 weight, f32 accumulation + f32 output.
    out1, out2 = multimodal_forward(x1, x2, w1, b1, w2, b2)
    jax.block_until_ready((out1, out2))
    assert out1.shape == (batch, output_size) and out2.shape == (batch, output_size)
    assert jnp.allclose(out1, ref1, atol=2e-2, rtol=2e-2)
    assert jnp.allclose(out2, ref2, atol=2e-2, rtol=2e-2)

    # Full-f32 path: bit-for-bit-level agreement with the reference.
    out1f, out2f = multimodal_forward(x1, x2, w1, b1, w2, b2, cast_bf16=False)
    jax.block_until_ready((out1f, out2f))
    assert jnp.allclose(out1f, ref1, atol=1e-5, rtol=1e-5)
    assert jnp.allclose(out2f, ref2, atol=1e-5, rtol=1e-5)

    print("KERNEL_OK")
</pallas_src>

<mosaic_0001>
module attributes {stable_mosaic.version = 11 : i64} {
  func.func @_mlp_kernel(%arg0: i32, %arg1: memref<16x32xbf16, #tpu.memory_space<vmem>>, %arg2: memref<16x32xbf16, #tpu.memory_space<vmem>>, %arg3: memref<32x64xbf16, #tpu.memory_space<vmem>>, %arg4: memref<1x64xf32, #tpu.memory_space<vmem>>, %arg5: memref<64x8xf32, #tpu.memory_space<vmem>>, %arg6: memref<1x8xf32, #tpu.memory_space<vmem>>, %arg7: memref<16x8xf32, #tpu.memory_space<vmem>>, %arg8: memref<16x8xf32, #tpu.memory_space<vmem>>) attributes {dimension_semantics = [#tpu.dimension_semantics<parallel>], iteration_bounds = array<i64: 1>, scalar_prefetch = 0 : i64, scratch_operands = 0 : i64, tpu.core_type = #tpu.core_type<tc>, window_params = [{transform_indices = @transform_0, window_bounds = array<i64: 16, 32>}, {transform_indices = @transform_1, window_bounds = array<i64: 16, 32>}, {pipeline_mode = #tpu.pipeline_mode<synchronous>, transform_indices = @transform_2, window_bounds = array<i64: 32, 64>}, {pipeline_mode = #tpu.pipeline_mode<synchronous>, transform_indices = @transform_3, window_bounds = array<i64: 1, 64>}, {pipeline_mode = #tpu.pipeline_mode<synchronous>, transform_indices = @transform_4, window_bounds = array<i64: 64, 8>}, {pipeline_mode = #tpu.pipeline_mode<synchronous>, transform_indices = @transform_5, window_bounds = array<i64: 1, 8>}, {transform_indices = @transform_6, window_bounds = array<i64: 16, 8>}, {transform_indices = @transform_7, window_bounds = array<i64: 16, 8>}]} {
    %c0 = arith.constant 0 : index
    %c0_0 = arith.constant 0 : index
    %0 = vector.load %arg3[%c0, %c0_0] : memref<32x64xbf16, #tpu.memory_space<vmem>>, vector<32x64xbf16>
    %c0_1 = arith.constant 0 : index
    %c0_2 = arith.constant 0 : index
    %1 = vector.load %arg4[%c0_1, %c0_2] : memref<1x64xf32, #tpu.memory_space<vmem>>, vector<1x64xf32>
    %c0_3 = arith.constant 0 : index
    %c0_4 = arith.constant 0 : index
    %2 = vector.load %arg5[%c0_3, %c0_4] : memref<64x8xf32, #tpu.memory_space<vmem>>, vector<64x8xf32>
    %c0_5 = arith.constant 0 : index
    %c0_6 = arith.constant 0 : index
    %3 = vector.load %arg6[%c0_5, %c0_6] : memref<1x8xf32, #tpu.memory_space<vmem>>, vector<1x8xf32>
    %c0_7 = arith.constant 0 : index
    %c0_8 = arith.constant 0 : index
    %4 = vector.load %arg1[%c0_7, %c0_8] : memref<16x32xbf16, #tpu.memory_space<vmem>>, vector<16x32xbf16>
    %cst = arith.constant dense<0.000000e+00> : vector<16x64xf32>
    %5 = tpu.matmul %4, %0, %cst {dimension_numbers = #tpu.dot_dimension_numbers<[1], [0], [0], [1], [0, 0, 1, 1], [], []>} : vector<16x32xbf16>, vector<32x64xbf16>, vector<16x64xf32> -> vector<16x64xf32>
    %6 = vector.broadcast %1 : vector<1x64xf32> to vector<16x64xf32>
    %7 = arith.addf %5, %6 : vector<16x64xf32>
    %cst_9 = arith.constant 0.000000e+00 : f32
    %8 = vector.broadcast %cst_9 : f32 to vector<16x64xf32>
    %9 = arith.maximumf %7, %8 : vector<16x64xf32>
    %cst_10 = arith.constant dense<0.000000e+00> : vector<16x8xf32>
    %10 = tpu.matmul %9, %2, %cst_10 {dimension_numbers = #tpu.dot_dimension_numbers<[1], [0], [0], [1], [0, 0, 1, 1], [], []>} : vector<16x64xf32>, vector<64x8xf32>, vector<16x8xf32> -> vector<16x8xf32>
    %11 = vector.broadcast %3 : vector<1x8xf32> to vector<16x8xf32>
    %12 = arith.addf %10, %11 : vector<16x8xf32>
    %c0_11 = arith.constant 0 : index
    %c0_12 = arith.constant 0 : index
    %13 = vector.load %arg7[%c0_11, %c0_12] : memref<16x8xf32, #tpu.memory_space<vmem>>, vector<16x8xf32>
    tpu.vector_store %arg7[%c0_11, %c0_12], %12 {strides = array<i32>} : memref<16x8xf32, #tpu.memory_space<vmem>>, vector<16x8xf32>,
    %c0_13 = arith.constant 0 : index
    %c0_14 = arith.constant 0 : index
    %14 = vector.load %arg2[%c0_13, %c0_14] : memref<16x32xbf16, #tpu.memory_space<vmem>>, vector<16x32xbf16>
    %cst_15 = arith.constant dense<0.000000e+00> : vector<16x64xf32>
    %15 = tpu.matmul %14, %0, %cst_15 {dimension_numbers = #tpu.dot_dimension_numbers<[1], [0], [0], [1], [0, 0, 1, 1], [], []>} : vector<16x32xbf16>, vector<32x64xbf16>, vector<16x64xf32> -> vector<16x64xf32>
    %16 = vector.broadcast %1 : vector<1x64xf32> to vector<16x64xf32>
    %17 = arith.addf %15, %16 : vector<16x64xf32>
    %cst_16 = arith.constant 0.000000e+00 : f32
    %18 = vector.broadcast %cst_16 : f32 to vector<16x64xf32>
    %19 = arith.maximumf %17, %18 : vector<16x64xf32>
    %cst_17 = arith.constant dense<0.000000e+00> : vector<16x8xf32>
    %20 = tpu.matmul %19, %2, %cst_17 {dimension_numbers = #tpu.dot_dimension_numbers<[1], [0], [0], [1], [0, 0, 1, 1], [], []>} : vector<16x64xf32>, vector<64x8xf32>, vector<16x8xf32> -> vector<16x8xf32>
    %21 = vector.broadcast %3 : vector<1x8xf32> to vector<16x8xf32>
    %22 = arith.addf %20, %21 : vector<16x8xf32>
    %c0_18 = arith.constant 0 : index
    %c0_19 = arith.constant 0 : index
    %23 = vector.load %arg8[%c0_18, %c0_19] : memref<16x8xf32, #tpu.memory_space<vmem>>, vector<16x8xf32>
    tpu.vector_store %arg8[%c0_18, %c0_19], %22 {strides = array<i32>} : memref<16x8xf32, #tpu.memory_space<vmem>>, vector<16x8xf32>,
    return
  }
  func.func @transform_0(%arg0: i32) -> (i32, i32) {
    %c0_i32 = arith.constant 0 : i32
    %c0_i32_0 = arith.constant 0 : i32
    return %arg0, %c0_i32 : i32, i32
  }
  func.func @transform_1(%arg0: i32) -> (i32, i32) {
    %c0_i32 = arith.constant 0 : i32
    %c0_i32_0 = arith.constant 0 : i32
    return %arg0, %c0_i32 : i32, i32
  }
  func.func @transform_2(%arg0: i32) -> (i32, i32) {
    %c0_i32 = arith.constant 0 : i32
    %c0_i32_0 = arith.constant 0 : i32
    %c0_i32_1 = arith.constant 0 : i32
    return %c0_i32, %c0_i32_0 : i32, i32
  }
  func.func @transform_3(%arg0: i32) -> (i32, i32) {
    %c0_i32 = arith.constant 0 : i32
    %c0_i32_0 = arith.constant 0 : i32
    %c0_i32_1 = arith.constant 0 : i32
    return %c0_i32, %c0_i32_0 : i32, i32
  }
  func.func @transform_4(%arg0: i32) -> (i32, i32) {
    %c0_i32 = arith.constant 0 : i32
    %c0_i32_0 = arith.constant 0 : i32
    %c0_i32_1 = arith.constant 0 : i32
    return %c0_i32, %c0_i32_0 : i32, i32
  }
  func.func @transform_5(%arg0: i32) -> (i32, i32) {
    %c0_i32 = arith.constant 0 : i32
    %c0_i32_0 = arith.constant 0 : i32
    %c0_i32_1 = arith.constant 0 : i32
    return %c0_i32, %c0_i32_0 : i32, i32
  }
  func.func @transform_6(%arg0: i32) -> (i32, i32) {
    %c0_i32 = arith.constant 0 : i32
    %c0_i32_0 = arith.constant 0 : i32
    return %arg0, %c0_i32 : i32, i32
  }
  func.func @transform_7(%arg0: i32) -> (i32, i32) {
    %c0_i32 = arith.constant 0 : i32
    %c0_i32_0 = arith.constant 0 : i32
    return %arg0, %c0_i32 : i32, i32
  }
}

</mosaic_0001>

<llo_original>
// kernel: multimodal_forward.1
$region0: #{multimodal_forward.1}
  #allocation0 [shape = 'u32[]', space=smem, size = 0x4, offset = 0x4, fixed_abs, tag = 'smem constant byte address 0x4 - core index']
  #allocation1 [shape = 'u32[144,128]{1,0:T(1,128)}', space=vmem, size = 0x12000, scoped, tag = 'internal scratch']
  %s0 = inlined_call_operand.vmem [shape: bf16[4,32], index: 0, kind: input, shape index: {}]
  %s1 = inlined_call_operand.vmem [shape: bf16[4,32], index: 1, kind: input, shape index: {}]
  %s2 = inlined_call_operand.vmem [shape: bf16[32,64], index: 2, kind: input, shape index: {}]
  %s3 = inlined_call_operand.vmem [shape: f32[1,64], index: 3, kind: input, shape index: {}]
  %s4 = inlined_call_operand.vmem [shape: f32[64,8], index: 4, kind: input, shape index: {}]
  %s5 = inlined_call_operand.vmem [shape: f32[1,8], index: 5, kind: input, shape index: {}]
  %s6 = inlined_call_operand.hbm [shape: f32[4,8], index: 6, kind: output, shape index: {0}]
  %s7 = inlined_call_operand.hbm [shape: f32[4,8], index: 7, kind: output, shape index: {1}]
  %8 = xla_tuple %s6, %s7
  %s9 = sld [smem:[#allocation0]]
  $region42: #{multimodal_forward.1} parent=0
    _
  %s11 = ssub.s32 1, %s9
  %s12 = scalar_select 0, %s11, %s9
  $region1: #{multimodal_forward.1} parent=0
    #allocation2 [shape = 'u8[8192]{0}', space=vmem, size = 0x2000, scoped, tag = 'output window, operand 0, single buffered']
    #allocation3 [shape = 's32[1]{0}', space=sflag, size = 0x4, scoped, tag = 'scoped memory for multimodal_forward.1']
    #allocation4 [shape = 'u8[8192]{0}', space=vmem, size = 0x2000, scoped, tag = 'output window, operand 1, single buffered']
    #allocation5 [shape = 's32[1]{0}', space=sflag, size = 0x4, scoped, tag = 'scoped memory for multimodal_forward.1']
    %13 = vsyncpa [#allocation3], 0
    %14 = vsyncpa [#allocation5], 0
    // Predicated region
    $region2: #{multimodal_forward.1} parent=1 // pred_check
      _
    $region3: #{multimodal_forward.1} parent=1 // pred_check_branch
      %16 = sbr.rel (0) target = $region5
    $region4: #{multimodal_forward.1} parent=1 // pred_region
      _
    $region5: #{multimodal_forward.1} parent=1 // pred_fallthru
      _
    // Predicated region
    $region6: #{multimodal_forward.1} parent=1 // pred_check
      _
    $region7: #{multimodal_forward.1} parent=1 // pred_check_branch
      %18 = sbr.rel (0) target = $region9
    $region8: #{multimodal_forward.1} parent=1 // pred_region
      _
    $region9: #{multimodal_forward.1} parent=1 // pred_fallthru
      _
    // Predicated region
    $region10: #{multimodal_forward.1} parent=1 // pred_check
      _
    $region11: #{multimodal_forward.1} parent=1 // pred_check_branch
      %20 = sbr.rel (0) target = $region13
    $region12: #{multimodal_forward.1} parent=1 // pred_region
      _
    $region13: #{multimodal_forward.1} parent=1 // pred_fallthru
      _
    // Predicated region
    $region14: #{multimodal_forward.1} parent=1 // pred_check
      _
    $region15: #{multimodal_forward.1} parent=1 // pred_check_branch
      %22 = sbr.rel (0) target = $region17
    $region16: #{multimodal_forward.1} parent=1 // pred_region
      _
    $region17: #{multimodal_forward.1} parent=1 // pred_fallthru
      _
    // Predicated region
    $region18: #{multimodal_forward.1} parent=1 // pred_check
      _
    $region19: #{multimodal_forward.1} parent=1 // pred_check_branch
      %24 = sbr.rel (0) target = $region21
    $region20: #{multimodal_forward.1} parent=1 // pred_region
      _
    $region21: #{multimodal_forward.1} parent=1 // pred_fallthru
      _
    // Predicated region
    $region22: #{multimodal_forward.1} parent=1 // pred_check
      _
    $region23: #{multimodal_forward.1} parent=1 // pred_check_branch
      %26 = sbr.rel (0) target = $region25
    $region24: #{multimodal_forward.1} parent=1 // pred_region
      _
    $region25: #{multimodal_forward.1} parent=1 // pred_fallthru
      _
    %v28 = vld [vmem:[%s2] sm:$0xf]
    %v29 = vld [vmem:[%s2 + $0x4] sm:$0xf]
    %v30 = vld [vmem:[%s2 + $0x8] sm:$0xf]
    %v31 = vld [vmem:[%s2 + $0xc] sm:$0xf]
    %v32 = vld [vmem:[%s3] sm:$0x1]
    %v33 = vld [vmem:[%s4] sm:$0xff]
    %v34 = vld [vmem:[%s4 + $0x8] sm:$0xff]
    %v35 = vld [vmem:[%s4 + $0x10] sm:$0xff]
    %v36 = vld [vmem:[%s4 + $0x18] sm:$0xff]
    %v37 = vld [vmem:[%s4 + $0x20] sm:$0xff]
    %v38 = vld [vmem:[%s4 + $0x28] sm:$0xff]
    %v39 = vld [vmem:[%s4 + $0x30] sm:$0xff]
    %v40 = vld [vmem:[%s4 + $0x38] sm:$0xff]
    %v41 = vld [vmem:[%s5] sm:$0x1]
    %v42 = vld [vmem:[%s0] sm:$0x3]
    %v43 = vld [vmem:[%s0 + $0x2] sm:$0x3]
    %v44 = vld [vmem:[%s0 + $0x4] sm:$0x3]
    %v45 = vld [vmem:[%s0 + $0x6] sm:$0x3]
    %v47 = vlaneseq
    %v48 = vshrl.u32 %v47, 7
    %v49 = vsub.s32 0, %v48
    %v50 = vrot.slane %v32, %v49
    %v56 = vcombine.low %v42, %v43
    %v57 = vcombine.low %v44, %v45
    %v59 = vunpack.c.l.s4 1983009808
    %v60 = vunpack.c.0.s8 %v59
    %v61 = vlaneseq
    %v62 = vshrl.u32 %v61, 7
    %v63 = vsub.s32 %v60, %v62
    %v64 = vrot.slane %v56, %v63
    %v66 = vunpack.c.l.s4 1983009808
    %v67 = vunpack.c.0.s8 %v66
    %v68 = vlaneseq
    %v69 = vshrl.u32 %v68, 7
    %v70 = vsub.s32 %v67, %v69
    %v71 = vrot.slane %v57, %v70
    %v72 = vcombine.low %v64, %v71
    %v77 = vunpack.c.l.b16 %v28
    %v78 = vunpack.c.l.b16 %v29
    %v79 = vunpack.c.l.b16 %v30
    %v80 = vunpack.c.l.b16 %v31
    %v81 = vpack.c.b16 %v78, %v77
    %v82 = vpack.c.b16 %v80, %v79
    %vm85 = vcmask 261120
    %v87 = vsel %vm85, %v72, 0
    %89 = vmatprep.subr.bf16.mxu0 0
    %90 = vmatpush1.bf16.msra.mxu0 %v81
    %91 = vmatprep.subr.bf16.mxu0 0
    %92 = vmatpush1.bf16.msra.mxu0 %v82
    %93 = vmatprep.subr.bf16.mxu0 0
    %94 = vmatpush1.bf16.msra.mxu0 0
    %95 = vmatprep.subr.bf16.mxu0 0
    %96 = vmatpush1.bf16.msra.mxu0 0
    %97 = vmatprep.subr.bf16.mxu0 0
    %98 = vmatpush1.bf16.msra.mxu0 0
    %99 = vmatprep.subr.bf16.mxu0 0
    %100 = vmatpush1.bf16.msra.mxu0 0
    %101 = vmatprep.subr.bf16.mxu0 0
    %102 = vmatpush1.bf16.msra.mxu0 0
    %103 = vmatprep.subr.bf16.mxu0 0
    %104 = vmatpush1.bf16.msra.mxu0 0
    %105 = vmatprep.subr.bf16.mxu0 0
    %106 = vmatpush1.bf16.msra.mxu0 0
    %107 = vmatprep.subr.bf16.mxu0 0
    %108 = vmatpush1.bf16.msra.mxu0 0
    %109 = vmatprep.subr.bf16.mxu0 0
    %110 = vmatpush1.bf16.msra.mxu0 0
    %111 = vmatprep.subr.bf16.mxu0 0
    %112 = vmatpush1.bf16.msra.mxu0 0
    %113 = vmatprep.subr.bf16.mxu0 0
    %114 = vmatpush1.bf16.msra.mxu0 0
    %115 = vmatprep.subr.bf16.mxu0 0
    %116 = vmatpush1.bf16.msra.mxu0 0
    %117 = vmatprep.subr.bf16.mxu0 0
    %118 = vmatpush1.bf16.msra.mxu0 0
    %119 = vmatprep.subr.bf16.mxu0 0
    %120 = vmatpush1.bf16.msra.mxu0 0
    %121 = vmatprep.mubr.bf16.mxu0 0
    %122 = vmatmul.mubr.bf16.gmra.mrb[0].mxu0 %v87
    %v123 = vpop.f32.mrb[0].mxu0
    %v124 = vadd.f32 %v50, %v123
    %v125 = vpop.f32.mrb[0].mxu0
    %v126 = vpop.f32.mrb[0].mxu0
    %v127 = vadd.f32 %v50, %v126
    %v128 = vpop.f32.mrb[0].mxu0
    %129 = vdwg.mxu0
    %v130 = vmax.f32 %v124, 0.0
    %v131 = vmax.f32 %v127, 0.0
    %v133 = vlaneseq
    %v134 = vshrl.u32 %v133, 7
    %v135 = vsub.s32 0, %v134
    %v136 = vrot.slane %v41, %v135
    %vm138 = vcmask 523264
    %v140 = vsel %vm138, %v130, 0
    %v143 = vsel %vm138, %v131, 0
    %145 = vmatprep.subr.mxu0 0.0
    %146 = vmatpush1.msra.mxu0 %v33
    %147 = vmatprep.subr.mxu0 0.0
    %148 = vmatpush1.msra.mxu0 %v34
    %149 = vmatprep.subr.mxu0 0.0
    %150 = vmatpush1.msra.mxu0 %v35
    %151 = vmatprep.subr.mxu0 0.0
    %152 = vmatpush1.msra.mxu0 %v36
    %153 = vmatprep.subr.mxu0 0.0
    %154 = vmatpush1.msra.mxu0 %v37
    %155 = vmatprep.subr.mxu0 0.0
    %156 = vmatpush1.msra.mxu0 %v38
    %157 = vmatprep.subr.mxu0 0.0
    %158 = vmatpush1.msra.mxu0 %v39
    %159 = vmatprep.subr.mxu0 0.0
    %160 = vmatpush1.msra.mxu0 %v40
    %161 = vmatprep.subr.mxu0 0.0
    %162 = vmatpush1.msra.mxu0 0.0
    %163 = vmatprep.subr.mxu0 0.0
    %164 = vmatpush1.msra.mxu0 0.0
    %165 = vmatprep.subr.mxu0 0.0
    %166 = vmatpush1.msra.mxu0 0.0
    %167 = vmatprep.subr.mxu0 0.0
    %168 = vmatpush1.msra.mxu0 0.0
    %169 = vmatprep.subr.mxu0 0.0
    %170 = vmatpush1.msra.mxu0 0.0
    %171 = vmatprep.subr.mxu0 0.0
    %172 = vmatpush1.msra.mxu0 0.0
    %173 = vmatprep.subr.mxu0 0.0
    %174 = vmatpush1.msra.mxu0 0.0
    %175 = vmatprep.subr.mxu0 0.0
    %176 = vmatpush1.msra.mxu0 0.0
    %177 = vmatprep.subr.mxu0 0.0
    %178 = vmatpush1.msra.mxu0 0.0
    %179 = vmatprep.subr.mxu0 0.0
    %180 = vmatpush1.msra.mxu0 0.0
    %181 = vmatprep.subr.mxu0 0.0
    %182 = vmatpush1.msra.mxu0 0.0
    %183 = vmatprep.subr.mxu0 0.0
    %184 = vmatpush1.msra.mxu0 0.0
    %185 = vmatprep.subr.mxu0 0.0
    %186 = vmatpush1.msra.mxu0 0.0
    %187 = vmatprep.subr.mxu0 0.0
    %188 = vmatpush1.msra.mxu0 0.0
    %189 = vmatprep.subr.mxu0 0.0
    %190 = vmatpush1.msra.mxu0 0.0
    %191 = vmatprep.subr.mxu0 0.0
    %192 = vmatpush1.msra.mxu0 0.0
    %193 = vmatprep.subr.mxu0 0.0
    %194 = vmatpush1.msra.mxu0 0.0
    %195 = vmatprep.subr.mxu0 0.0
    %196 = vmatpush1.msra.mxu0 0.0
    %197 = vmatprep.subr.mxu0 0.0
    %198 = vmatpush1.msra.mxu0 0.0
    %199 = vmatprep.subr.mxu0 0.0
    %200 = vmatpush1.msra.mxu0 0.0
    %201 = vmatprep.subr.mxu0 0.0
    %202 = vmatpush1.msra.mxu0 0.0
    %203 = vmatprep.subr.mxu0 0.0
    %204 = vmatpush1.msra.mxu0 0.0
    %205 = vmatprep.subr.mxu0 0.0
    %206 = vmatpush1.msra.mxu0 0.0
    %207 = vmatprep.subr.mxu0 0.0
    %208 = vmatpush1.msra.mxu0 0.0
    %209 = vmatprep.mubr.f32.mxu0 0.0
    %210 = vmatmul.mubr.f32.gmra.mrb[0].mxu0 %v140
    %v211 = vpop.f32.mrb[0].mxu0
    %v212 = vadd.f32 %v136, %v211
    %v213 = vpop.f32.mrb[0].mxu0
    %214 = vmatprep.mubr.f32.mxu0 0.0
    %215 = vmatmul.mubr.f32.gmra.mrb[0].mxu0 %v143
    %v216 = vpop.f32.mrb[0].mxu0
    %v217 = vadd.f32 %v136, %v216
    %v218 = vpop.f32.mrb[0].mxu0
    %219 = vdwg.mxu0
    %vm220 = vcmask 64512
    %221 = vst.msk [vmem:[#allocation2] sm:$0xff] %vm220, %v212
    %222 = vst.msk [vmem:[#allocation2 + $0x8] sm:$0xff] %vm220, %v217
    %v223 = vld [vmem:[%s1] sm:$0x3]
    %v224 = vld [vmem:[%s1 + $0x2] sm:$0x3]
    %v225 = vld [vmem:[%s1 + $0x4] sm:$0x3]
    %v226 = vld [vmem:[%s1 + $0x6] sm:$0x3]
    %v231 = vcombine.low %v223, %v224
    %v232 = vcombine.low %v225, %v226
    %v234 = vunpack.c.l.s4 1983009808
    %v235 = vunpack.c.0.s8 %v234
    %v236 = vlaneseq
    %v237 = vshrl.u32 %v236, 7
    %v238 = vsub.s32 %v235, %v237
    %v239 = vrot.slane %v231, %v238
    %v241 = vunpack.c.l.s4 1983009808
    %v242 = vunpack.c.0.s8 %v241
    %v243 = vlaneseq
    %v244 = vshrl.u32 %v243, 7
    %v245 = vsub.s32 %v242, %v244
    %v246 = vrot.slane %v232, %v245
    %v247 = vcombine.low %v239, %v246
    %v249 = vsel %vm85, %v247, 0
    %251 = vmatprep.subr.bf16.mxu0 0
    %252 = vmatpush1.bf16.msra.mxu0 %v81
    %253 = vmatprep.subr.bf16.mxu0 0
    %254 = vmatpush1.bf16.msra.mxu0 %v82
    %255 = vmatprep.subr.bf16.mxu0 0
    %256 = vmatpush1.bf16.msra.mxu0 0
    %257 = vmatprep.subr.bf16.mxu0 0
    %258 = vmatpush1.bf16.msra.mxu0 0
    %259 = vmatprep.subr.bf16.mxu0 0
    %260 = vmatpush1.bf16.msra.mxu0 0
    %261 = vmatprep.subr.bf16.mxu0 0
    %262 = vmatpush1.bf16.msra.mxu0 0
    %263 = vmatprep.subr.bf16.mxu0 0
    %264 = vmatpush1.bf16.msra.mxu0 0
    %265 = vmatprep.subr.bf16.mxu0 0
    %266 = vmatpush1.bf16.msra.mxu0 0
    %267 = vmatprep.subr.bf16.mxu0 0
    %268 = vmatpush1.bf16.msra.mxu0 0
    %269 = vmatprep.subr.bf16.mxu0 0
    %270 = vmatpush1.bf16.msra.mxu0 0
    %271 = vmatprep.subr.bf16.mxu0 0
    %272 = vmatpush1.bf16.msra.mxu0 0
    %273 = vmatprep.subr.bf16.mxu0 0
    %274 = vmatpush1.bf16.msra.mxu0 0
    %275 = vmatprep.subr.bf16.mxu0 0
    %276 = vmatpush1.bf16.msra.mxu0 0
    %277 = vmatprep.subr.bf16.mxu0 0
    %278 = vmatpush1.bf16.msra.mxu0 0
    %279 = vmatprep.subr.bf16.mxu0 0
    %280 = vmatpush1.bf16.msra.mxu0 0
    %281 = vmatprep.subr.bf16.mxu0 0
    %282 = vmatpush1.bf16.msra.mxu0 0
    %283 = vmatprep.mubr.bf16.mxu0 0
    %284 = vmatmul.mubr.bf16.gmra.mrb[0].mxu0 %v249
    %v285 = vpop.f32.mrb[0].mxu0
    %v286 = vadd.f32 %v50, %v285
    %v287 = vpop.f32.mrb[0].mxu0
    %v288 = vpop.f32.mrb[0].mxu0
    %v289 = vadd.f32 %v50, %v288
    %v290 = vpop.f32.mrb[0].mxu0
    %291 = vdwg.mxu0
    %v292 = vmax.f32 %v286, 0.0
    %v293 = vmax.f32 %v289, 0.0
    %v295 = vsel %vm138, %v292, 0
    %v298 = vsel %vm138, %v293, 0
    %300 = vmatprep.subr.mxu0 0.0
    %301 = vmatpush1.msra.mxu0 %v33
    %302 = vmatprep.subr.mxu0 0.0
    %303 = vmatpush1.msra.mxu0 %v34
    %304 = vmatprep.subr.mxu0 0.0
    %305 = vmatpush1.msra.mxu0 %v35
    %306 = vmatprep.subr.mxu0 0.0
    %307 = vmatpush1.msra.mxu0 %v36
    %308 = vmatprep.subr.mxu0 0.0
    %309 = vmatpush1.msra.mxu0 %v37
    %310 = vmatprep.subr.mxu0 0.0
    %311 = vmatpush1.msra.mxu0 %v38
    %312 = vmatprep.subr.mxu0 0.0
    %313 = vmatpush1.msra.mxu0 %v39
    %314 = vmatprep.subr.mxu0 0.0
    %315 = vmatpush1.msra.mxu0 %v40
    %316 = vmatprep.subr.mxu0 0.0
    %317 = vmatpush1.msra.mxu0 0.0
    %318 = vmatprep.subr.mxu0 0.0
    %319 = vmatpush1.msra.mxu0 0.0
    %320 = vmatprep.subr.mxu0 0.0
    %321 = vmatpush1.msra.mxu0 0.0
    %322 = vmatprep.subr.mxu0 0.0
    %323 = vmatpush1.msra.mxu0 0.0
    %324 = vmatprep.subr.mxu0 0.0
    %325 = vmatpush1.msra.mxu0 0.0
    %326 = vmatprep.subr.mxu0 0.0
    %327 = vmatpush1.msra.mxu0 0.0
    %328 = vmatprep.subr.mxu0 0.0
    %329 = vmatpush1.msra.mxu0 0.0
    %330 = vmatprep.subr.mxu0 0.0
    %331 = vmatpush1.msra.mxu0 0.0
    %332 = vmatprep.subr.mxu0 0.0
    %333 = vmatpush1.msra.mxu0 0.0
    %334 = vmatprep.subr.mxu0 0.0
    %335 = vmatpush1.msra.mxu0 0.0
    %336 = vmatprep.subr.mxu0 0.0
    %337 = vmatpush1.msra.mxu0 0.0
    %338 = vmatprep.subr.mxu0 0.0
    %339 = vmatpush1.msra.mxu0 0.0
    %340 = vmatprep.subr.mxu0 0.0
    %341 = vmatpush1.msra.mxu0 0.0
    %342 = vmatprep.subr.mxu0 0.0
    %343 = vmatpush1.msra.mxu0 0.0
    %344 = vmatprep.subr.mxu0 0.0
    %345 = vmatpush1.msra.mxu0 0.0
    %346 = vmatprep.subr.mxu0 0.0
    %347 = vmatpush1.msra.mxu0 0.0
    %348 = vmatprep.subr.mxu0 0.0
    %349 = vmatpush1.msra.mxu0 0.0
    %350 = vmatprep.subr.mxu0 0.0
    %351 = vmatpush1.msra.mxu0 0.0
    %352 = vmatprep.subr.mxu0 0.0
    %353 = vmatpush1.msra.mxu0 0.0
    %354 = vmatprep.subr.mxu0 0.0
    %355 = vmatpush1.msra.mxu0 0.0
    %356 = vmatprep.subr.mxu0 0.0
    %357 = vmatpush1.msra.mxu0 0.0
    %358 = vmatprep.subr.mxu0 0.0
    %359 = vmatpush1.msra.mxu0 0.0
    %360 = vmatprep.subr.mxu0 0.0
    %361 = vmatpush1.msra.mxu0 0.0
    %362 = vmatprep.subr.mxu0 0.0
    %363 = vmatpush1.msra.mxu0 0.0
    %364 = vmatprep.mubr.f32.mxu0 0.0
    %365 = vmatmul.mubr.f32.gmra.mrb[0].mxu0 %v295
    %v366 = vpop.f32.mrb[0].mxu0
    %v367 = vadd.f32 %v136, %v366
    %v368 = vpop.f32.mrb[0].mxu0
    %369 = vmatprep.mubr.f32.mxu0 0.0
    %370 = vmatmul.mubr.f32.gmra.mrb[0].mxu0 %v298
    %v371 = vpop.f32.mrb[0].mxu0
    %v372 = vadd.f32 %v136, %v371
    %v373 = vpop.f32.mrb[0].mxu0
    %374 = vdwg.mxu0
    %375 = vst.msk [vmem:[#allocation4] sm:$0xff] %vm220, %v367
    %376 = vst.msk [vmem:[#allocation4 + $0x8] sm:$0xff] %vm220, %v372
    // Predicated region
    $region26: #{multimodal_forward.1} parent=1 // pred_check
      _
    $region27: #{multimodal_forward.1} parent=1 // pred_check_branch
      %378 = sbr.rel (0) target = $region29
    $region28: #{multimodal_forward.1} parent=1 // pred_region
      %s380 = ssub.s32 256, 64
      %381 = vsyncadd [#allocation3], %s380
      %s382 = sshll.u32 [#allocation2], 4
      %s383 = int_to_ptr.vmem [resolvable:$true] %s382
      %388 = dma.vmem_to_hbm [thread:$0]  %s383, 64, %s6, [#allocation3], 64, 64, 4
    $region29: #{multimodal_forward.1} parent=1 // pred_fallthru
      _
    // Predicated region
    $region30: #{multimodal_forward.1} parent=1 // pred_check
      _
    $region31: #{multimodal_forward.1} parent=1 // pred_check_branch
      %390 = sbr.rel (0) target = $region33
    $region32: #{multimodal_forward.1} parent=1 // pred_region
      %s392 = ssub.s32 256, 64
      %393 = vsyncadd [#allocation5], %s392
      %s394 = sshll.u32 [#allocation4], 4
      %s395 = int_to_ptr.vmem [resolvable:$true] %s394
      %400 = dma.vmem_to_hbm [thread:$0]  %s395, 64, %s7, [#allocation5], 64, 64, 4
    $region33: #{multimodal_forward.1} parent=1 // pred_fallthru
      _
    // Predicated region
    $region34: #{multimodal_forward.1} parent=1 // pred_check
      _
    $region35: #{multimodal_forward.1} parent=1 // pred_check_branch
      %402 = sbr.rel (0) target = $region37
    $region36: #{multimodal_forward.1} parent=1 // pred_region
      %403 = dma.done [#allocation3], 256
    $region37: #{multimodal_forward.1} parent=1 // pred_fallthru
      _
    // Predicated region
    $region38: #{multimodal_forward.1} parent=1 // pred_check
      _
    $region39: #{multimodal_forward.1} parent=1 // pred_check_branch
      %405 = sbr.rel (0) target = $region41
    $region40: #{multimodal_forward.1} parent=1 // pred_region
      %406 = dma.done [#allocation5], 256
    $region41: #{multimodal_forward.1} parent=1 // pred_fallthru
      _
    %407 = vsyncpa [#allocation3], 1
    %408 = vsyncpa [#allocation5], 1

</llo_original>
